<compile_context>
chip_gen: v6e
topology: v6e:2x2x1
jax: 0.10.0
libtpu: 0.0.40
codegen_flags: <defaults>
</compile_context>

<pallas_src>
import functools

import jax
import jax.numpy as jnp
from jax.experimental import pallas as pl
from jax.experimental.pallas import tpu as pltpu

NEGATIVE_SLOPE = 0.2
MASK_VALUE = -1e30  # finite "-inf" so m/l recurrences never hit inf - inf


def _round_up(x, m):
    return ((x + m - 1) // m) * m


def _pick_tile(n, candidates):
    for c in candidates:
        if n % c == 0:
            return c
    return 128  # n is always a multiple of 128 by construction


# --------------------------------------------------------------------------
# Stage 1: projection + attention scores (one MXU matmul per node tile)
# --------------------------------------------------------------------------
def _project_kernel(x_ref, w_ref, feat_ref, el_ref, er_ref, *, hf, nh):
    # x_ref: (TILE_P, Din)   w_ref: (Din, HF + 2H)
    # y columns: [ projected features (HF) | el (H) | er (H) ]
    y = jnp.dot(x_ref[...], w_ref[...], preferred_element_type=jnp.float32)
    feat_ref[...] = y[:, :hf]
    el_ref[...] = y[:, hf:hf + nh]
    er_ref[...] = y[:, hf + nh:hf + 2 * nh]


# --------------------------------------------------------------------------
# Stage 2: edge softmax (online, over src tiles) + aggregation, heads fused
# --------------------------------------------------------------------------
def _attend_kernel(er_ref, el_ref, feat_ref, adj_ref, bias_ref, out_ref,
                   m_ref, l_ref, *, nh, fo):
    # er_ref:   (TILE_D, H)        destination scores for this dst tile
    # el_ref:   (H, TILE_S)        source scores, lane-major (no in-kernel transpose)
    # feat_ref: (TILE_S, H*F)      projected source features
    # adj_ref:  (TILE_D, TILE_S)   int8 adjacency tile, adj[dst, src]
    # bias_ref: (1, H*F)
    # out_ref:  (TILE_D, H*F)      lane-dense output block (also the accumulator)
    # m_ref/l_ref: (TILE_D, H)     running max / running denom per head
    j = pl.program_id(1)
    nj = pl.num_programs(1)

    @pl.when(j == 0)
    def _init():
        m_ref[...] = jnp.full_like(m_ref, MASK_VALUE)
        l_ref[...] = jnp.zeros_like(l_ref)
        out_ref[...] = jnp.zeros_like(out_ref)

    adj = adj_ref[...]                       # int8
    edge = adj > 0
    adj_f = adj.astype(jnp.float32)

    er = er_ref[...]                         # (TILE_D, H)
    feat = feat_ref[...]                     # (TILE_S, H*F)
    m_old = m_ref[...]                       # (TILE_D, H)
    l_old = l_ref[...]                       # (TILE_D, H)
    acc_old = out_ref[...]                   # (TILE_D, H*F)

    m_cols, l_cols, acc_cols = [], [], []
    for h in range(nh):                      # static unroll over heads
        el_h = el_ref[h:h + 1, :]            # (1, TILE_S) -- already lane-major
        er_h = er[:, h:h + 1]                # (TILE_D, 1)
        e = er_h + el_h                      # (TILE_D, TILE_S)
        e = jnp.where(e > 0, e, NEGATIVE_SLOPE * e)          # LeakyReLU(0.2)
        e = jnp.where(edge, e, MASK_VALUE)                   # mask non-edges

        m_prev = m_old[:, h:h + 1]                           # (TILE_D, 1)
        m_new = jnp.maximum(m_prev, jnp.max(e, axis=-1, keepdims=True))
        alpha = jnp.exp(m_prev - m_new)                      # rescale factor
        p = jnp.exp(e - m_new) * adj_f                       # unnormalised attn
        l_new = alpha * l_old[:, h:h + 1] + jnp.sum(p, axis=-1, keepdims=True)

        feat_h = feat[:, h * fo:(h + 1) * fo]                # (TILE_S, F)
        acc_h = alpha * acc_old[:, h * fo:(h + 1) * fo] + jnp.dot(
            p, feat_h, preferred_element_type=jnp.float32)   # (TILE_D, F)

        m_cols.append(m_new)
        l_cols.append(l_new)
        acc_cols.append(acc_h)

    acc_new = jnp.concatenate(acc_cols, axis=1)              # (TILE_D, H*F)
    l_new_all = jnp.concatenate(l_cols, axis=1)              # (TILE_D, H)
    m_ref[...] = jnp.concatenate(m_cols, axis=1)
    l_ref[...] = l_new_all
    out_ref[...] = acc_new                                   # full-lane store

    @pl.when(j == nj - 1)
    def _finalize():
        # Deferred softmax normalisation: scale the (TILE_D, F) accumulator,
        # not the (TILE_D, TILE_S) attention matrix.  EUP approx reciprocal.
        inv_l = pl.reciprocal(l_new_all, approx=True)        # (TILE_D, H)
        cols = [acc_new[:, h * fo:(h + 1) * fo] * inv_l[:, h:h + 1]
                for h in range(nh)]
        out_ref[...] = jnp.concatenate(cols, axis=1) + bias_ref[...]


# --------------------------------------------------------------------------
# Wrapper
# --------------------------------------------------------------------------
def gat_conv_forward(x, adj, W, attn_l, attn_r, bias, num_heads, out_feats):
    """x: (N, Din), adj[dst, src]: (N, N), W: (Din, H*F), attn_l/r: (H, F),
    bias: (H*F,).  Returns (N, H*F) == torch.flatten(rst, start_dim=1)."""
    N, Din = x.shape
    H, F = num_heads, out_feats
    HF = H * F

    # Fold the attention inner products into the weight matrix: the same MXU
    # matmul that projects the features also produces el and er.
    W3 = W.reshape(Din, H, F)
    w_el = jnp.einsum("dhf,hf->dh", W3, attn_l)              # (Din, H)
    w_er = jnp.einsum("dhf,hf->dh", W3, attn_r)              # (Din, H)
    w_aug = jnp.concatenate([W, w_el, w_er], axis=1)         # (Din, HF + 2H)

    # Pad node count to a multiple of 128 so every tile is (8,128)-friendly.
    n_pad = _round_up(max(N, 128), 128)
    if n_pad != N:
        x = jnp.pad(x, ((0, n_pad - N), (0, 0)))
        adj = jnp.pad(adj, ((0, n_pad - N), (0, n_pad - N)))

    adj_i8 = (adj > 0).astype(jnp.int8)      # 4x less HBM/VMEM than f32 adj

    tile_p = _pick_tile(n_pad, (512, 256, 128))   # projection node tile
    tile_d = _pick_tile(n_pad, (256, 128))        # destination tile
    tile_s = _pick_tile(n_pad, (512, 256, 128))   # source tile (online softmax)

    # ---- Stage 1: projection + scores -------------------------------------
    feat, el, er = pl.pallas_call(
        functools.partial(_project_kernel, hf=HF, nh=H),
        out_shape=(
            jax.ShapeDtypeStruct((n_pad, HF), jnp.float32),
            jax.ShapeDtypeStruct((n_pad, H), jnp.float32),
            jax.ShapeDtypeStruct((n_pad, H), jnp.float32),
        ),
        grid_spec=pltpu.PrefetchScalarGridSpec(
            num_scalar_prefetch=0,
            grid=(n_pad // tile_p,),
            in_specs=[
                pl.BlockSpec((tile_p, Din), lambda i: (i, 0)),
                pl.BlockSpec((Din, HF + 2 * H), lambda i: (0, 0)),
            ],
            out_specs=[
                pl.BlockSpec((tile_p, HF), lambda i: (i, 0)),
                pl.BlockSpec((tile_p, H), lambda i: (i, 0)),
                pl.BlockSpec((tile_p, H), lambda i: (i, 0)),
            ],
        ),
        compiler_params=pltpu.CompilerParams(
            dimension_semantics=("parallel",)),
    )(x.astype(jnp.float32), w_aug.astype(jnp.float32))

    # Source scores lane-major (H, N): lets the attention kernel broadcast a
    # (1, TILE_S) row per head without an in-kernel skinny transpose.  Tiny.
    el_t = el.T

    bias_2d = bias.reshape(1, HF).astype(jnp.float32)

    # ---- Stage 2: edge softmax + aggregation -------------------------------
    out = pl.pallas_call(
        functools.partial(_attend_kernel, nh=H, fo=F),
        out_shape=jax.ShapeDtypeStruct((n_pad, HF), jnp.float32),
        grid_spec=pltpu.PrefetchScalarGridSpec(
            num_scalar_prefetch=0,
            grid=(n_pad // tile_d, n_pad // tile_s),
            in_specs=[
                pl.BlockSpec((tile_d, H), lambda i, j: (i, 0)),        # er (dst)
                pl.BlockSpec((H, tile_s), lambda i, j: (0, j)),        # el^T (src)
                pl.BlockSpec((tile_s, HF), lambda i, j: (j, 0)),       # feat (src)
                pl.BlockSpec((tile_d, tile_s), lambda i, j: (i, j)),   # adj tile
                pl.BlockSpec((1, HF), lambda i, j: (0, 0)),            # bias
            ],
            out_specs=pl.BlockSpec((tile_d, HF), lambda i, j: (i, 0)),
            scratch_shapes=[
                pltpu.VMEM((tile_d, H), jnp.float32),   # running max  m
                pltpu.VMEM((tile_d, H), jnp.float32),   # running denom l
            ],
        ),
        compiler_params=pltpu.CompilerParams(
            dimension_semantics=("parallel", "arbitrary")),
    )(er, el_t, feat, adj_i8, bias_2d)

    return out[:N]


# --------------------------------------------------------------------------
# Pure-JAX reference mirroring the PyTorch/DGL forward (fp32 throughout)
# --------------------------------------------------------------------------
def gat_conv_reference(x, adj, W, attn_l, attn_r, bias, num_heads, out_feats):
    N, Din = x.shape
    H, F = num_heads, out_feats
    feat = (x @ W).reshape(N, H, F)
    el = jnp.sum(feat * attn_l[None, :, :], axis=-1)   # (N, H) source
    er = jnp.sum(feat * attn_r[None, :, :], axis=-1)   # (N, H) dest
    e = er[:, None, :] + el[None, :, :]                # (N_dst, N_src, H)
    e = jnp.where(e > 0, e, NEGATIVE_SLOPE * e)
    edge = (adj > 0)[:, :, None]
    e = jnp.where(edge, e, -1e30)
    m = jnp.max(e, axis=1, keepdims=True)
    p = jnp.where(edge, jnp.exp(e - m), 0.0)
    a = p / jnp.sum(p, axis=1, keepdims=True)
    rst = jnp.einsum("vuh,uhf->vhf", a, feat)           # (N, H, F)
    rst = rst + bias.reshape(1, H, F)
    return rst.reshape(N, H * F)


if __name__ == "__main__":
    # Small deterministic setup (H*F = 128 -> lane-dense output blocks).
    N = 128          # number of nodes
    D_IN = 64        # input feature dim
    H = 4            # num_heads
    F_OUT = 32       # out_feats

    key = jax.random.PRNGKey(0)
    k_x, k_w, k_al, k_ar, k_adj = jax.random.split(key, 5)

    x = jax.random.normal(k_x, (N, D_IN), dtype=jnp.float32)

    # Xavier-normal-style deterministic init (gain = sqrt(2), as in reset_parameters).
    gain = 2.0 ** 0.5
    std_w = gain * (2.0 / (D_IN + H * F_OUT)) ** 0.5
    W = std_w * jax.random.normal(k_w, (D_IN, H * F_OUT), dtype=jnp.float32)
    std_a = gain * (2.0 / (1 + F_OUT)) ** 0.5
    attn_l = std_a * jax.random.normal(k_al, (H, F_OUT), dtype=jnp.float32)
    attn_r = std_a * jax.random.normal(k_ar, (H, F_OUT), dtype=jnp.float32)
    bias = jnp.zeros((H * F_OUT,), dtype=jnp.float32)   # constant_(bias, 0)

    # Deterministic graph: random sparse edges + self-loops (so in-degree > 0).
    # adj[dst, src] = 1 if edge src->dst.
    rand_edges = (jax.random.uniform(k_adj, (N, N)) < 0.05).astype(jnp.float32)
    adj = jnp.maximum(rand_edges, jnp.eye(N, dtype=jnp.float32))

    out = gat_conv_forward(x, adj, W, attn_l, attn_r, bias, H, F_OUT)
    out = jax.block_until_ready(out)

    ref = gat_conv_reference(x, adj, W, attn_l, attn_r, bias, H, F_OUT)
    assert out.shape == (N, H * F_OUT)
    # Tolerance relaxed slightly vs a pure-f32 path: final normalisation uses
    # the EUP approximate reciprocal and el/er are folded into the projection
    # matmul (different fp32 summation order).
    assert jnp.allclose(out, ref, atol=2e-3, rtol=2e-2), "mismatch vs JAX reference"

    print("KERNEL_OK")
</pallas_src>

<mosaic_0001>
module attributes {stable_mosaic.version = 11 : i64} {
  func.func @_project_kernel(%arg0: i32, %arg1: memref<128x64xf32, #tpu.memory_space<vmem>>, %arg2: memref<64x136xf32, #tpu.memory_space<vmem>>, %arg3: memref<128x128xf32, #tpu.memory_space<vmem>>, %arg4: memref<128x4xf32, #tpu.memory_space<vmem>>, %arg5: memref<128x4xf32, #tpu.memory_space<vmem>>) attributes {dimension_semantics = [#tpu.dimension_semantics<parallel>], iteration_bounds = array<i64: 1>, scalar_prefetch = 0 : i64, scratch_operands = 0 : i64, tpu.core_type = #tpu.core_type<tc>, window_params = [{transform_indices = @transform_0, window_bounds = array<i64: 128, 64>}, {pipeline_mode = #tpu.pipeline_mode<synchronous>, transform_indices = @transform_1, window_bounds = array<i64: 64, 136>}, {transform_indices = @transform_2, window_bounds = array<i64: 128, 128>}, {transform_indices = @transform_3, window_bounds = array<i64: 128, 4>}, {transform_indices = @transform_4, window_bounds = array<i64: 128, 4>}]} {
    %c0 = arith.constant 0 : index
    %c0_0 = arith.constant 0 : index
    %0 = vector.load %arg1[%c0, %c0_0] : memref<128x64xf32, #tpu.memory_space<vmem>>, vector<128x64xf32>
    %c0_1 = arith.constant 0 : index
    %c0_2 = arith.constant 0 : index
    %1 = vector.load %arg2[%c0_1, %c0_2] : memref<64x136xf32, #tpu.memory_space<vmem>>, vector<64x136xf32>
    %cst = arith.constant dense<0.000000e+00> : vector<128x136xf32>
    %2 = tpu.matmul %0, %1, %cst {dimension_numbers = #tpu.dot_dimension_numbers<[1], [0], [0], [1], [0, 0, 1, 1], [], []>} : vector<128x64xf32>, vector<64x136xf32>, vector<128x136xf32> -> vector<128x136xf32>
    %3 = vector.extract_strided_slice %2 {offsets = [0, 0], sizes = [128, 128], strides = [1, 1]} : vector<128x136xf32> to vector<128x128xf32>
    %c0_3 = arith.constant 0 : index
    %c0_4 = arith.constant 0 : index
    %4 = vector.load %arg3[%c0_3, %c0_4] : memref<128x128xf32, #tpu.memory_space<vmem>>, vector<128x128xf32>
    tpu.vector_store %arg3[%c0_3, %c0_4], %3 {strides = array<i32>} : memref<128x128xf32, #tpu.memory_space<vmem>>, vector<128x128xf32>,
    %5 = vector.extract_strided_slice %2 {offsets = [0, 128], sizes = [128, 4], strides = [1, 1]} : vector<128x136xf32> to vector<128x4xf32>
    %c0_5 = arith.constant 0 : index
    %c0_6 = arith.constant 0 : index
    %6 = vector.load %arg4[%c0_5, %c0_6] : memref<128x4xf32, #tpu.memory_space<vmem>>, vector<128x4xf32>
    tpu.vector_store %arg4[%c0_5, %c0_6], %5 {strides = array<i32>} : memref<128x4xf32, #tpu.memory_space<vmem>>, vector<128x4xf32>,
    %7 = vector.extract_strided_slice %2 {offsets = [0, 132], sizes = [128, 4], strides = [1, 1]} : vector<128x136xf32> to vector<128x4xf32>
    %c0_7 = arith.constant 0 : index
    %c0_8 = arith.constant 0 : index
    %8 = vector.load %arg5[%c0_7, %c0_8] : memref<128x4xf32, #tpu.memory_space<vmem>>, vector<128x4xf32>
    tpu.vector_store %arg5[%c0_7, %c0_8], %7 {strides = array<i32>} : memref<128x4xf32, #tpu.memory_space<vmem>>, vector<128x4xf32>,
    return
  }
  func.func @transform_0(%arg0: i32) -> (i32, i32) {
    %c0_i32 = arith.constant 0 : i32
    %c0_i32_0 = arith.constant 0 : i32
    return %arg0, %c0_i32 : i32, i32
  }
  func.func @transform_1(%arg0: i32) -> (i32, i32) {
    %c0_i32 = arith.constant 0 : i32
    %c0_i32_0 = arith.constant 0 : i32
    %c0_i32_1 = arith.constant 0 : i32
    return %c0_i32, %c0_i32_0 : i32, i32
  }
  func.func @transform_2(%arg0: i32) -> (i32, i32) {
    %c0_i32 = arith.constant 0 : i32
    %c0_i32_0 = arith.constant 0 : i32
    return %arg0, %c0_i32 : i32, i32
  }
  func.func @transform_3(%arg0: i32) -> (i32, i32) {
    %c0_i32 = arith.constant 0 : i32
    %c0_i32_0 = arith.constant 0 : i32
    return %arg0, %c0_i32 : i32, i32
  }
  func.func @transform_4(%arg0: i32) -> (i32, i32) {
    %c0_i32 = arith.constant 0 : i32
    %c0_i32_0 = arith.constant 0 : i32
    return %arg0, %c0_i32 : i32, i32
  }
}

</mosaic_0001>

<llo_original>
// kernel: tpu_custom_call.1
$region0: #{tpu_custom_call.1}
  #allocation0 [shape = 'u32[]', space=smem, size = 0x4, offset = 0x4, fixed_abs, tag = 'smem constant byte address 0x4 - core index']
  #allocation1 [shape = 'u32[144,128]{1,0:T(1,128)}', space=vmem, size = 0x12000, scoped, tag = 'internal scratch']
  %s0 = inlined_call_operand.vmem [shape: f32[128,64], index: 0, kind: input, shape index: {}]
  %s1 = inlined_call_operand.vmem [shape: f32[64,136], index: 1, kind: input, shape index: {}]
  %s2 = inlined_call_operand.hbm [shape: f32[128,128], index: 2, kind: output, shape index: {0}]
  %s3 = inlined_call_operand.vmem [shape: f32[128,4], index: 3, kind: output, shape index: {1}]
  %s4 = inlined_call_operand.vmem [shape: f32[128,4], index: 4, kind: output, shape index: {2}]
  %5 = xla_tuple %s2, %s3, %s4
  %s6 = sld [smem:[#allocation0]]
  $region34: #{tpu_custom_call.1} parent=0
    _
  %s8 = ssub.s32 1, %s6
  %s9 = scalar_select 0, %s8, %s6
  $region1: #{tpu_custom_call.1} parent=0
    #allocation2 [shape = 'u8[65536]{0}', space=vmem, size = 0x10000, scoped, tag = 'output window, operand 0, single buffered']
    #allocation3 [shape = 's32[1]{0}', space=sflag, size = 0x4, scoped, tag = 'scoped memory for tpu_custom_call.1']
    %10 = vsyncpa [#allocation3], 0
    // Predicated region
    $region2: #{tpu_custom_call.1} parent=1 // pred_check
      _
    $region3: #{tpu_custom_call.1} parent=1 // pred_check_branch
      %12 = sbr.rel (0) target = $region5
    $region4: #{tpu_custom_call.1} parent=1 // pred_region
      _
    $region5: #{tpu_custom_call.1} parent=1 // pred_fallthru
      _
    // Predicated region
    $region6: #{tpu_custom_call.1} parent=1 // pred_check
      _
    $region7: #{tpu_custom_call.1} parent=1 // pred_check_branch
      %14 = sbr.rel (0) target = $region9
    $region8: #{tpu_custom_call.1} parent=1 // pred_region
      _
    $region9: #{tpu_custom_call.1} parent=1 // pred_fallthru
      _
    %v15 = vld [vmem:[%s0] sm:$0xff]
    %v16 = vld [vmem:[%s0 + $0x8] sm:$0xff]
    %v17 = vld [vmem:[%s0 + $0x10] sm:$0xff]
    %v18 = vld [vmem:[%s0 + $0x18] sm:$0xff]
    %v19 = vld [vmem:[%s0 + $0x20] sm:$0xff]
    %v20 = vld [vmem:[%s0 + $0x28] sm:$0xff]
    %v21 = vld [vmem:[%s0 + $0x30] sm:$0xff]
    %v22 = vld [vmem:[%s0 + $0x38] sm:$0xff]
    %v23 = vld [vmem:[%s0 + $0x40] sm:$0xff]
    %v24 = vld [vmem:[%s0 + $0x48] sm:$0xff]
    %v25 = vld [vmem:[%s0 + $0x50] sm:$0xff]
    %v26 = vld [vmem:[%s0 + $0x58] sm:$0xff]
    %v27 = vld [vmem:[%s0 + $0x60] sm:$0xff]
    %v28 = vld [vmem:[%s0 + $0x68] sm:$0xff]
    %v29 = vld [vmem:[%s0 + $0x70] sm:$0xff]
    %v30 = vld [vmem:[%s0 + $0x78] sm:$0xff]
    %v31 = vld [vmem:[%s1] sm:$0xff]
    %v32 = vld [vmem:[%s1 + $0x8] sm:$0xff]
    %v33 = vld [vmem:[%s1 + $0x10] sm:$0xff]
    %v34 = vld [vmem:[%s1 + $0x18] sm:$0xff]
    %v35 = vld [vmem:[%s1 + $0x20] sm:$0xff]
    %v36 = vld [vmem:[%s1 + $0x28] sm:$0xff]
    %v37 = vld [vmem:[%s1 + $0x30] sm:$0xff]
    %v38 = vld [vmem:[%s1 + $0x38] sm:$0xff]
    %v39 = vld [vmem:[%s1 + $0x40] sm:$0xff]
    %v40 = vld [vmem:[%s1 + $0x48] sm:$0xff]
    %v41 = vld [vmem:[%s1 + $0x50] sm:$0xff]
    %v42 = vld [vmem:[%s1 + $0x58] sm:$0xff]
    %v43 = vld [vmem:[%s1 + $0x60] sm:$0xff]
    %v44 = vld [vmem:[%s1 + $0x68] sm:$0xff]
    %v45 = vld [vmem:[%s1 + $0x70] sm:$0xff]
    %v46 = vld [vmem:[%s1 + $0x78] sm:$0xff]
    %vm47 = vcmask 523264
    %v49 = vsel %vm47, %v15, 0
    %v52 = vsel %vm47, %v16, 0
    %v55 = vsel %vm47, %v17, 0
    %v58 = vsel %vm47, %v18, 0
    %v61 = vsel %vm47, %v19, 0
    %v64 = vsel %vm47, %v20, 0
    %v67 = vsel %vm47, %v21, 0
    %v70 = vsel %vm47, %v22, 0
    %v73 = vsel %vm47, %v23, 0
    %v76 = vsel %vm47, %v24, 0
    %v79 = vsel %vm47, %v25, 0
    %v82 = vsel %vm47, %v26, 0
    %v85 = vsel %vm47, %v27, 0
    %v88 = vsel %vm47, %v28, 0
    %v91 = vsel %vm47, %v29, 0
    %v94 = vsel %vm47, %v30, 0
    %96 = vmatprep.subr.mxu0 0.0
    %97 = vmatpush1.msra.mxu0 0.0
    %98 = vmatprep.subr.mxu0 0.0
    %99 = vmatpush1.msra.mxu0 0.0
    %100 = vmatprep.subr.mxu0 0.0
    %101 = vmatpush1.msra.mxu0 0.0
    %102 = vmatprep.subr.mxu0 0.0
    %103 = vmatpush1.msra.mxu0 0.0
    %104 = vmatprep.subr.mxu0 0.0
    %105 = vmatpush1.msra.mxu0 0.0
    %106 = vmatprep.subr.mxu0 0.0
    %107 = vmatpush1.msra.mxu0 0.0
    %108 = vmatprep.subr.mxu0 0.0
    %109 = vmatpush1.msra.mxu0 0.0
    %110 = vmatprep.subr.mxu0 0.0
    %111 = vmatpush1.msra.mxu0 0.0
    %112 = vmatprep.subr.mxu0 %v46
    %113 = vmatpush1.msra.mxu0 %v45
    %114 = vmatprep.subr.mxu0 %v44
    %115 = vmatpush1.msra.mxu0 %v43
    %116 = vmatprep.subr.mxu0 %v42
    %117 = vmatpush1.msra.mxu0 %v41
    %118 = vmatprep.subr.mxu0 %v40
    %119 = vmatpush1.msra.mxu0 %v39
    %120 = vmatprep.subr.mxu0 %v38
    %121 = vmatpush1.msra.mxu0 %v37
    %122 = vmatprep.subr.mxu0 %v36
    %123 = vmatpush1.msra.mxu0 %v35
    %124 = vmatprep.subr.mxu0 %v34
    %125 = vmatpush1.msra.mxu0 %v33
    %126 = vmatprep.subr.mxu0 %v32
    %127 = vmatpush1.msra.mxu0 %v31
    %128 = vmatprep.subr.mxu0 0.0
    %129 = vmatpush2.msra.mxu0 0.0
    %130 = vmatprep.subr.mxu0 0.0
    %131 = vmatpush2.msra.mxu0 0.0
    %132 = vmatprep.subr.mxu0 0.0
    %133 = vmatpush2.msra.mxu0 0.0
    %134 = vmatprep.subr.mxu0 0.0
    %135 = vmatpush2.msra.mxu0 0.0
    %136 = vmatprep.subr.mxu0 0.0
    %137 = vmatpush2.msra.mxu0 0.0
    %138 = vmatprep.subr.mxu0 0.0
    %139 = vmatpush2.msra.mxu0 0.0
    %140 = vmatprep.subr.mxu0 0.0
    %141 = vmatpush2.msra.mxu0 0.0
    %142 = vmatprep.subr.mxu0 0.0
    %143 = vmatpush2.msra.mxu0 0.0
    %144 = vmatprep.subr.mxu0 0.0
    %145 = vmatpush2.msra.mxu0 0.0
    %146 = vmatprep.subr.mxu0 0.0
    %147 = vmatpush2.msra.mxu0 0.0
    %148 = vmatprep.subr.mxu0 0.0
    %149 = vmatpush2.msra.mxu0 0.0
    %150 = vmatprep.subr.mxu0 0.0
    %151 = vmatpush2.msra.mxu0 0.0
    %152 = vmatprep.subr.mxu0 0.0
    %153 = vmatpush2.msra.mxu0 0.0
    %154 = vmatprep.subr.mxu0 0.0
    %155 = vmatpush2.msra.mxu0 0.0
    %156 = vmatprep.subr.mxu0 0.0
    %157 = vmatpush2.msra.mxu0 0.0
    %158 = vmatprep.subr.mxu0 0.0
    %159 = vmatpush2.msra.mxu0 0.0
    %160 = vmatprep.mubr.f32.mxu0 0.0
    %161 = vmatmul.mubr.f32.gmra.mxu0 %v49
    %v162 = vpop.f32.mrf.mxu0
    %v163 = vadd.f32 0.0, %v162
    %v164 = vpop.f32.mrf.mxu0
    %v165 = vadd.f32 0.0, %v164
    %166 = vmatprep.mubr.f32.mxu0 0.0
    %167 = vmatmul.mubr.f32.gmra.mxu0 %v52
    %v168 = vpop.f32.mrf.mxu0
    %v169 = vadd.f32 0.0, %v168
    %v170 = vpop.f32.mrf.mxu0
    %v171 = vadd.f32 0.0, %v170
    %172 = vmatprep.mubr.f32.mxu0 0.0
    %173 = vmatmul.mubr.f32.gmra.mxu0 %v55
    %v174 = vpop.f32.mrf.mxu0
    %v175 = vadd.f32 0.0, %v174
    %v176 = vpop.f32.mrf.mxu0
    %v177 = vadd.f32 0.0, %v176
    %178 = vmatprep.mubr.f32.mxu0 0.0
    %179 = vmatmul.mubr.f32.gmra.mxu0 %v58
    %v180 = vpop.f32.mrf.mxu0
    %v181 = vadd.f32 0.0, %v180
    %v182 = vpop.f32.mrf.mxu0
    %v183 = vadd.f32 0.0, %v182
    %184 = vmatprep.mubr.f32.mxu0 0.0
    %185 = vmatmul.mubr.f32.gmra.mxu0 %v61
    %v186 = vpop.f32.mrf.mxu0
    %v187 = vadd.f32 0.0, %v186
    %v188 = vpop.f32.mrf.mxu0
    %v189 = vadd.f32 0.0, %v188
    %190 = vmatprep.mubr.f32.mxu0 0.0
    %191 = vmatmul.mubr.f32.gmra.mxu0 %v64
    %v192 = vpop.f32.mrf.mxu0
    %v193 = vadd.f32 0.0, %v192
    %v194 = vpop.f32.mrf.mxu0
    %v195 = vadd.f32 0.0, %v194
    %196 = vmatprep.mubr.f32.mxu0 0.0
    %197 = vmatmul.mubr.f32.gmra.mxu0 %v67
    %v198 = vpop.f32.mrf.mxu0
    %v199 = vadd.f32 0.0, %v198
    %v200 = vpop.f32.mrf.mxu0
    %v201 = vadd.f32 0.0, %v200
    %202 = vmatprep.mubr.f32.mxu0 0.0
    %203 = vmatmul.mubr.f32.gmra.mxu0 %v70
    %v204 = vpop.f32.mrf.mxu0
    %v205 = vadd.f32 0.0, %v204
    %v206 = vpop.f32.mrf.mxu0
    %v207 = vadd.f32 0.0, %v206
    %208 = vmatprep.mubr.f32.mxu0 0.0
    %209 = vmatmul.mubr.f32.gmra.mxu0 %v73
    %v210 = vpop.f32.mrf.mxu0
    %v211 = vadd.f32 0.0, %v210
    %v212 = vpop.f32.mrf.mxu0
    %v213 = vadd.f32 0.0, %v212
    %214 = vmatprep.mubr.f32.mxu0 0.0
    %215 = vmatmul.mubr.f32.gmra.mxu0 %v76
    %v216 = vpop.f32.mrf.mxu0
    %v217 = vadd.f32 0.0, %v216
    %v218 = vpop.f32.mrf.mxu0
    %v219 = vadd.f32 0.0, %v218
    %220 = vmatprep.mubr.f32.mxu0 0.0
    %221 = vmatmul.mubr.f32.gmra.mxu0 %v79
    %v222 = vpop.f32.mrf.mxu0
    %v223 = vadd.f32 0.0, %v222
    %v224 = vpop.f32.mrf.mxu0
    %v225 = vadd.f32 0.0, %v224
    %226 = vmatprep.mubr.f32.mxu0 0.0
    %227 = vmatmul.mubr.f32.gmra.mxu0 %v82
    %v228 = vpop.f32.mrf.mxu0
    %v229 = vadd.f32 0.0, %v228
    %v230 = vpop.f32.mrf.mxu0
    %v231 = vadd.f32 0.0, %v230
    %232 = vmatprep.mubr.f32.mxu0 0.0
    %233 = vmatmul.mubr.f32.gmra.mxu0 %v85
    %v234 = vpop.f32.mrf.mxu0
    %v235 = vadd.f32 0.0, %v234
    %v236 = vpop.f32.mrf.mxu0
    %v237 = vadd.f32 0.0, %v236
    %238 = vmatprep.mubr.f32.mxu0 0.0
    %239 = vmatmul.mubr.f32.gmra.mxu0 %v88
    %v240 = vpop.f32.mrf.mxu0
    %v241 = vadd.f32 0.0, %v240
    %v242 = vpop.f32.mrf.mxu0
    %v243 = vadd.f32 0.0, %v242
    %244 = vmatprep.mubr.f32.mxu0 0.0
    %245 = vmatmul.mubr.f32.gmra.mxu0 %v91
    %v246 = vpop.f32.mrf.mxu0
    %v247 = vadd.f32 0.0, %v246
    %v248 = vpop.f32.mrf.mxu0
    %v249 = vadd.f32 0.0, %v248
    %250 = vmatprep.mubr.f32.mxu0 0.0
    %251 = vmatmul.mubr.f32.gmra.mxu0 %v94
    %v252 = vpop.f32.mrf.mxu0
    %v253 = vadd.f32 0.0, %v252
    %v254 = vpop.f32.mrf.mxu0
    %v255 = vadd.f32 0.0, %v254
    %256 = vdwg.mxu0
    %257 = vst [vmem:[#allocation2] sm:$0xff] %v163
    %258 = vst [vmem:[#allocation2 + $0x8] sm:$0xff] %v169
    %259 = vst [vmem:[#allocation2 + $0x10] sm:$0xff] %v175
    %260 = vst [vmem:[#allocation2 + $0x18] sm:$0xff] %v181
    %261 = vst [vmem:[#allocation2 + $0x20] sm:$0xff] %v187
    %262 = vst [vmem:[#allocation2 + $0x28] sm:$0xff] %v193
    %263 = vst [vmem:[#allocation2 + $0x30] sm:$0xff] %v199
    %264 = vst [vmem:[#allocation2 + $0x38] sm:$0xff] %v205
    %265 = vst [vmem:[#allocation2 + $0x40] sm:$0xff] %v211
    %266 = vst [vmem:[#allocation2 + $0x48] sm:$0xff] %v217
    %267 = vst [vmem:[#allocation2 + $0x50] sm:$0xff] %v223
    %268 = vst [vmem:[#allocation2 + $0x58] sm:$0xff] %v229
    %269 = vst [vmem:[#allocation2 + $0x60] sm:$0xff] %v235
    %270 = vst [vmem:[#allocation2 + $0x68] sm:$0xff] %v241
    %271 = vst [vmem:[#allocation2 + $0x70] sm:$0xff] %v247
    %272 = vst [vmem:[#allocation2 + $0x78] sm:$0xff] %v253
    %vm273 = vcmask 31744
    %274 = vst.msk [vmem:[%s3] sm:$0xff] %vm273, %v165
    %275 = vst.msk [vmem:[%s3 + $0x8] sm:$0xff] %vm273, %v171
    %276 = vst.msk [vmem:[%s3 + $0x10] sm:$0xff] %vm273, %v177
    %277 = vst.msk [vmem:[%s3 + $0x18] sm:$0xff] %vm273, %v183
    %278 = vst.msk [vmem:[%s3 + $0x20] sm:$0xff] %vm273, %v189
    %279 = vst.msk [vmem:[%s3 + $0x28] sm:$0xff] %vm273, %v195
    %280 = vst.msk [vmem:[%s3 + $0x30] sm:$0xff] %vm273, %v201
    %281 = vst.msk [vmem:[%s3 + $0x38] sm:$0xff] %vm273, %v207
    %282 = vst.msk [vmem:[%s3 + $0x40] sm:$0xff] %vm273, %v213
    %283 = vst.msk [vmem:[%s3 + $0x48] sm:$0xff] %vm273, %v219
    %284 = vst.msk [vmem:[%s3 + $0x50] sm:$0xff] %vm273, %v225
    %285 = vst.msk [vmem:[%s3 + $0x58] sm:$0xff] %vm273, %v231
    %286 = vst.msk [vmem:[%s3 + $0x60] sm:$0xff] %vm273, %v237
    %287 = vst.msk [vmem:[%s3 + $0x68] sm:$0xff] %vm273, %v243
    %288 = vst.msk [vmem:[%s3 + $0x70] sm:$0xff] %vm273, %v249
    %289 = vst.msk [vmem:[%s3 + $0x78] sm:$0xff] %vm273, %v255
    %306 = vrot.lane.b32.xlu0 %v165, 124
    %v307 = vpop.permute.xlu0 %306
    %308 = vrot.lane.b32.xlu0 %v171, 124
    %v309 = vpop.permute.xlu0 %308
    %310 = vrot.lane.b32.xlu0 %v177, 124
    %v311 = vpop.permute.xlu0 %310
    %312 = vrot.lane.b32.xlu0 %v183, 124
    %v313 = vpop.permute.xlu0 %312
    %314 = vrot.lane.b32.xlu0 %v189, 124
    %v315 = vpop.permute.xlu0 %314
    %316 = vrot.lane.b32.xlu0 %v195, 124
    %v317 = vpop.permute.xlu0 %316
    %318 = vrot.lane.b32.xlu0 %v201, 124
    %v319 = vpop.permute.xlu0 %318
    %320 = vrot.lane.b32.xlu0 %v207, 124
    %v321 = vpop.permute.xlu0 %320
    %322 = vrot.lane.b32.xlu0 %v213, 124
    %v323 = vpop.permute.xlu0 %322
    %324 = vrot.lane.b32.xlu0 %v219, 124
    %v325 = vpop.permute.xlu0 %324
    %326 = vrot.lane.b32.xlu0 %v225, 124
    %v327 = vpop.permute.xlu0 %326
    %328 = vrot.lane.b32.xlu0 %v231, 124
    %v329 = vpop.permute.xlu0 %328
    %330 = vrot.lane.b32.xlu0 %v237, 124
    %v331 = vpop.permute.xlu0 %330
    %332 = vrot.lane.b32.xlu0 %v243, 124
    %v333 = vpop.permute.xlu0 %332
    %334 = vrot.lane.b32.xlu0 %v249, 124
    %v335 = vpop.permute.xlu0 %334
    %336 = vrot.lane.b32.xlu0 %v255, 124
    %v337 = vpop.permute.xlu0 %336
    %354 = vst.msk [vmem:[%s4] sm:$0xff] %vm273, %v307
    %355 = vst.msk [vmem:[%s4 + $0x8] sm:$0xff] %vm273, %v309
    %356 = vst.msk [vmem:[%s4 + $0x10] sm:$0xff] %vm273, %v311
    %357 = vst.msk [vmem:[%s4 + $0x18] sm:$0xff] %vm273, %v313
    %358 = vst.msk [vmem:[%s4 + $0x20] sm:$0xff] %vm273, %v315
    %359 = vst.msk [vmem:[%s4 + $0x28] sm:$0xff] %vm273, %v317
    %360 = vst.msk [vmem:[%s4 + $0x30] sm:$0xff] %vm273, %v319
    %361 = vst.msk [vmem:[%s4 + $0x38] sm:$0xff] %vm273, %v321
    %362 = vst.msk [vmem:[%s4 + $0x40] sm:$0xff] %vm273, %v323
    %363 = vst.msk [vmem:[%s4 + $0x48] sm:$0xff] %vm273, %v325
    %364 = vst.msk [vmem:[%s4 + $0x50] sm:$0xff] %vm273, %v327
    %365 = vst.msk [vmem:[%s4 + $0x58] sm:$0xff] %vm273, %v329
    %366 = vst.msk [vmem:[%s4 + $0x60] sm:$0xff] %vm273, %v331
    %367 = vst.msk [vmem:[%s4 + $0x68] sm:$0xff] %vm273, %v333
    %368 = vst.msk [vmem:[%s4 + $0x70] sm:$0xff] %vm273, %v335
    %369 = vst.msk [vmem:[%s4 + $0x78] sm:$0xff] %vm273, %v337
    // Predicated region
    $region10: #{tpu_custom_call.1} parent=1 // pred_check
      _
    $region11: #{tpu_custom_call.1} parent=1 // pred_check_branch
      %371 = sbr.rel (0) target = $region13
    $region12: #{tpu_custom_call.1} parent=1 // pred_region
      %s373 = ssub.s32 2048, 2048
      %374 = vsyncadd [#allocation3], %s373
      %s375 = sshll.u32 [#allocation2], 4
      %s376 = int_to_ptr.vmem [resolvable:$true] %s375
      %381 = dma.vmem_to_hbm [thread:$0]  %s376, 2048, %s2, [#allocation3], 128, 128, 8
    $region13: #{tpu_custom_call.1} parent=1 // pred_fallthru
      _
    // Predicated region
    $region14: #{tpu_custom_call.1} parent=1 // pred_check
      _
    $region15: #{tpu_custom_call.1} parent=1 // pred_check_branch
      %383 = sbr.rel (0) target = $region17
    $region16: #{tpu_custom_call.1} parent=1 // pred_region
      _
    $region17: #{tpu_custom_call.1} parent=1 // pred_fallthru
      _
    // Predicated region
    $region18: #{tpu_custom_call.1} parent=1 // pred_check
      _
    $region19: #{tpu_custom_call.1} parent=1 // pred_check_branch
      %385 = sbr.rel (0) target = $region21
    $region20: #{tpu_custom_call.1} parent=1 // pred_region
      _
    $region21: #{tpu_custom_call.1} parent=1 // pred_fallthru
      _
    // Predicated region
    $region22: #{tpu_custom_call.1} parent=1 // pred_check
      _
    $region23: #{tpu_custom_call.1} parent=1 // pred_check_branch
      %387 = sbr.rel (0) target = $region25
    $region24: #{tpu_custom_call.1} parent=1 // pred_region
      %388 = dma.done [#allocation3], 2048
    $region25: #{tpu_custom_call.1} parent=1 // pred_fallthru
      _
    // Predicated region
    $region26: #{tpu_custom_call.1} parent=1 // pred_check
      _
    $region27: #{tpu_custom_call.1} parent=1 // pred_check_branch
      %390 = sbr.rel (0) target = $region29
    $region28: #{tpu_custom_call.1} parent=1 // pred_region
      _
    $region29: #{tpu_custom_call.1} parent=1 // pred_fallthru
      _
    // Predicated region
    $region30: #{tpu_custom_call.1} parent=1 // pred_check
      _
    $region31: #{tpu_custom_call.1} parent=1 // pred_check_branch
      %392 = sbr.rel (0) target = $region33
    $region32: #{tpu_custom_call.1} parent=1 // pred_region
      _
    $region33: #{tpu_custom_call.1} parent=1 // pred_fallthru
      _
    %393 = vsyncpa [#allocation3], 1

</llo_original>
